<compile_context>
chip_gen: v7x
topology: tpu7x:2x2x1
jax: 0.10.0
libtpu: 0.0.40
codegen_flags: <defaults>
</compile_context>

<pallas_src>
import functools

import jax
import jax.numpy as jnp
from jax.experimental import pallas as pl
from jax.experimental.pallas import tpu as pltpu


def _round_up(x, m):
    return (x + m - 1) // m * m


def _mse_kernel(pred_ref, gt_ref, vis_ref, out_ref, *, scale, m_pad, tl):
    """Accumulates sum((vis * (pred - gt))^2) into a resident (8,128) block."""
    j = pl.program_id(1)

    @pl.when(j == 0)
    def _():
        out_ref[...] = jnp.zeros_like(out_ref)

    pred = pred_ref[...].astype(jnp.float32)          # in-kernel upcast (free VPU op)
    gt = gt_ref[...].astype(jnp.float32)
    vis = vis_ref[...]                                # (m_pad, 1) f32, lane-broadcast

    diff = (pred - gt) * vis                          # (m_pad, tl)
    sq = diff * diff
    # Tile-aligned split reduce: only vreg-wise VPU adds per step; the final
    # cross-lane/sublane XLU reduce is deferred to the wrapper.
    partial = jnp.sum(sq.reshape(m_pad // 8, 8, tl // 128, 128), axis=(0, 2))
    out_ref[...] += partial

    @pl.when(j == pl.num_programs(1) - 1)
    def _():
        out_ref[...] = out_ref[...] * scale


def keypoint_mse_loss(pred_heatmaps, gt_heatmaps, keypoint_vis=None, loss_weight=1.0):
    """Pallas implementation of KeypointMSELoss.forward.

    pred_heatmaps, gt_heatmaps: (B, N, H, W) float (f32 / bf16 / f16)
    keypoint_vis:               (B, N) float visibility mask (None -> all ones)
    returns: scalar float32 loss
    """
    B, N, H, W = pred_heatmaps.shape
    M, L = B * N, H * W

    if keypoint_vis is None:
        keypoint_vis = jnp.ones((B, N), dtype=jnp.float32)

    pred2 = pred_heatmaps.reshape(M, L)               # keep native dtype
    gt2 = gt_heatmaps.reshape(M, L)
    vis2 = keypoint_vis.reshape(M, 1).astype(jnp.float32)

    M_pad = _round_up(M, 8)
    itemsize = jnp.dtype(pred2.dtype).itemsize

    # Lane tile: largest multiple of 128 keeping 2 inputs x 2 pipeline buffers
    # of (M_pad, tl) under ~8 MiB, capped at 2048 lanes.
    L128 = _round_up(L, 128)
    budget = 8 * 1024 * 1024
    tl = budget // (4 * M_pad * itemsize)
    tl = max((tl // 128) * 128, 128)
    tl = min(tl, 2048, L128)

    n_lane_blocks = pl.cdiv(L, tl)
    NP = 2 if n_lane_blocks >= 2 else 1               # megacore split (helps v7x)
    nt = pl.cdiv(n_lane_blocks, NP)
    L_pad = NP * nt * tl

    # Zero padding contributes 0 to the sum (pred == gt == 0 there).
    if M_pad != M or L_pad != L:
        pred2 = jnp.pad(pred2, ((0, M_pad - M), (0, L_pad - L)))
        gt2 = jnp.pad(gt2, ((0, M_pad - M), (0, L_pad - L)))
    if M_pad != M:
        vis2 = jnp.pad(vis2, ((0, M_pad - M), (0, 0)))

    # mean over B*H*W per keypoint, then /N, then *loss_weight (unpadded counts)
    scale = float(loss_weight) / float(B * N * H * W)
    kernel = functools.partial(_mse_kernel, scale=scale, m_pad=M_pad, tl=tl)

    out = pl.pallas_call(
        kernel,
        out_shape=jax.ShapeDtypeStruct((NP * 8, 128), jnp.float32),
        grid_spec=pltpu.PrefetchScalarGridSpec(
            num_scalar_prefetch=0,
            grid=(NP, nt),
            in_specs=[
                pl.BlockSpec((M_pad, tl), lambda p, j: (0, p * nt + j)),  # pred tile
                pl.BlockSpec((M_pad, tl), lambda p, j: (0, p * nt + j)),  # gt tile
                pl.BlockSpec((M_pad, 1), lambda p, j: (0, 0)),            # visibility
            ],
            out_specs=pl.BlockSpec((8, 128), lambda p, j: (p, 0)),        # per-core partials
        ),
        compiler_params=pltpu.CompilerParams(
            dimension_semantics=("parallel", "arbitrary"),
            vmem_limit_bytes=32 * 1024 * 1024,
        ),
    )(pred2, gt2, vis2)

    # Single tiny reduce of the (NP*8, 128) partial-sum slab.
    return jnp.sum(out)


def keypoint_mse_loss_ref(pred, gt, vis, loss_weight=1.0):
    """Pure-JAX reference mirroring the PyTorch loop exactly."""
    B, N, H, W = pred.shape
    pred = pred.reshape(B, N, -1).astype(jnp.float32)
    gt = gt.reshape(B, N, -1).astype(jnp.float32)
    vis = vis.reshape(B, N, 1).astype(jnp.float32)
    loss = 0.0
    for idx in range(N):
        d = pred[:, idx] * vis[:, idx] - gt[:, idx] * vis[:, idx]
        loss += jnp.mean(d * d)
    return loss / N * loss_weight


if __name__ == "__main__":
    key = jax.random.PRNGKey(0)
    keys = jax.random.split(key, 9)

    def run_case(B, N, H, W, dtype, k1, k2, k3, loss_weight=0.7):
        pred = jax.random.normal(k1, (B, N, H, W), dtype=jnp.float32).astype(dtype)
        gt = jax.random.normal(k2, (B, N, H, W), dtype=jnp.float32).astype(dtype)
        vis = (jax.random.uniform(k3, (B, N)) > 0.3).astype(jnp.float32)

        loss = keypoint_mse_loss(pred, gt, vis, loss_weight=loss_weight)
        loss = jax.block_until_ready(loss)
        ref = keypoint_mse_loss_ref(pred, gt, vis, loss_weight=loss_weight)
        assert jnp.allclose(loss, ref, rtol=1e-5, atol=1e-6), (
            (B, N, H, W, str(dtype)), loss, ref)

    # aligned f32 case (original example shape)
    run_case(2, 4, 16, 16, jnp.float32, keys[0], keys[1], keys[2])
    # unaligned rows/lanes + bf16 input (exercises padding and in-kernel upcast)
    run_case(2, 3, 9, 11, jnp.bfloat16, keys[3], keys[4], keys[5])
    # wide spatial case that exercises the 2-way parallel (megacore) grid axis
    run_case(2, 4, 32, 96, jnp.float32, keys[6], keys[7], keys[8])

    print("KERNEL_OK")
</pallas_src>

<mosaic_0001>
module attributes {stable_mosaic.version = 11 : i64} {
  func.func @_mse_kernel(%arg0: i32, %arg1: i32, %arg2: memref<8x256xf32, #tpu.memory_space<vmem>>, %arg3: memref<8x256xf32, #tpu.memory_space<vmem>>, %arg4: memref<8x1xf32, #tpu.memory_space<vmem>>, %arg5: memref<8x128xf32, #tpu.memory_space<vmem>>) attributes {dimension_semantics = [#tpu.dimension_semantics<parallel>, #tpu.dimension_semantics<arbitrary>], iteration_bounds = array<i64: 1, 1>, scalar_prefetch = 0 : i64, scratch_operands = 0 : i64, tpu.core_type = #tpu.core_type<tc>, window_params = [{transform_indices = @transform_0, window_bounds = array<i64: 8, 256>}, {transform_indices = @transform_1, window_bounds = array<i64: 8, 256>}, {pipeline_mode = #tpu.pipeline_mode<synchronous>, transform_indices = @transform_2, window_bounds = array<i64: 8, 1>}, {transform_indices = @transform_3, window_bounds = array<i64: 8, 128>}]} {
    %c0_i32 = arith.constant 0 : i32
    %0 = arith.cmpi eq, %arg1, %c0_i32 : i32
    %1 = arith.extui %0 : i1 to i32
    %c0_i32_0 = arith.constant 0 : i32
    %2 = arith.cmpi ne, %1, %c0_i32_0 : i32
    scf.if %2 {
      %cst_12 = arith.constant 0.000000e+00 : f32
      %18 = vector.broadcast %cst_12 : f32 to vector<8x128xf32>
      %c0_13 = arith.constant 0 : index
      %c0_14 = arith.constant 0 : index
      %19 = vector.load %arg5[%c0_13, %c0_14] : memref<8x128xf32, #tpu.memory_space<vmem>>, vector<8x128xf32>
      tpu.vector_store %arg5[%c0_13, %c0_14], %18 {strides = array<i32>} : memref<8x128xf32, #tpu.memory_space<vmem>>, vector<8x128xf32>,
    } else {
    }
    %c0 = arith.constant 0 : index
    %c0_1 = arith.constant 0 : index
    %3 = vector.load %arg2[%c0, %c0_1] : memref<8x256xf32, #tpu.memory_space<vmem>>, vector<8x256xf32>
    %c0_2 = arith.constant 0 : index
    %c0_3 = arith.constant 0 : index
    %4 = vector.load %arg3[%c0_2, %c0_3] : memref<8x256xf32, #tpu.memory_space<vmem>>, vector<8x256xf32>
    %c0_4 = arith.constant 0 : index
    %c0_5 = arith.constant 0 : index
    %5 = vector.load %arg4[%c0_4, %c0_5] : memref<8x1xf32, #tpu.memory_space<vmem>>, vector<8x1xf32>
    %6 = arith.subf %3, %4 : vector<8x256xf32>
    %7 = vector.broadcast %5 : vector<8x1xf32> to vector<8x256xf32>
    %8 = arith.mulf %6, %7 : vector<8x256xf32>
    %9 = arith.mulf %8, %8 : vector<8x256xf32>
    %10 = vector.shape_cast %9 : vector<8x256xf32> to vector<1x8x2x128xf32>
    %cst = arith.constant dense<0.000000e+00> : vector<8x128xf32>
    %11 = vector.multi_reduction <add>, %10, %cst [0, 2] : vector<1x8x2x128xf32> to vector<8x128xf32>
    %c0_6 = arith.constant 0 : index
    %c0_7 = arith.constant 0 : index
    %12 = vector.load %arg5[%c0_6, %c0_7] : memref<8x128xf32, #tpu.memory_space<vmem>>, vector<8x128xf32>
    %13 = arith.addf %12, %11 : vector<8x128xf32>
    %c0_8 = arith.constant 0 : index
    %c0_9 = arith.constant 0 : index
    %14 = vector.load %arg5[%c0_8, %c0_9] : memref<8x128xf32, #tpu.memory_space<vmem>>, vector<8x128xf32>
    tpu.vector_store %arg5[%c0_8, %c0_9], %13 {strides = array<i32>} : memref<8x128xf32, #tpu.memory_space<vmem>>, vector<8x128xf32>,
    %c0_i32_10 = arith.constant 0 : i32
    %15 = arith.cmpi eq, %arg1, %c0_i32_10 : i32
    %16 = arith.extui %15 : i1 to i32
    %c0_i32_11 = arith.constant 0 : i32
    %17 = arith.cmpi ne, %16, %c0_i32_11 : i32
    scf.if %17 {
      %c0_12 = arith.constant 0 : index
      %c0_13 = arith.constant 0 : index
      %18 = vector.load %arg5[%c0_12, %c0_13] : memref<8x128xf32, #tpu.memory_space<vmem>>, vector<8x128xf32>
      %cst_14 = arith.constant 3.41796869E-4 : f32
      %19 = vector.broadcast %cst_14 : f32 to vector<8x128xf32>
      %20 = arith.mulf %18, %19 : vector<8x128xf32>
      %c0_15 = arith.constant 0 : index
      %c0_16 = arith.constant 0 : index
      %21 = vector.load %arg5[%c0_15, %c0_16] : memref<8x128xf32, #tpu.memory_space<vmem>>, vector<8x128xf32>
      tpu.vector_store %arg5[%c0_15, %c0_16], %20 {strides = array<i32>} : memref<8x128xf32, #tpu.memory_space<vmem>>, vector<8x128xf32>,
    } else {
    }
    return
  }
  func.func @transform_0(%arg0: i32, %arg1: i32) -> (i32, i32) {
    %c1_i32 = arith.constant 1 : i32
    %0 = arith.muli %arg0, %c1_i32 : i32
    %1 = arith.addi %0, %arg1 : i32
    %c0_i32 = arith.constant 0 : i32
    %c0_i32_0 = arith.constant 0 : i32
    return %c0_i32, %1 : i32, i32
  }
  func.func @transform_1(%arg0: i32, %arg1: i32) -> (i32, i32) {
    %c1_i32 = arith.constant 1 : i32
    %0 = arith.muli %arg0, %c1_i32 : i32
    %1 = arith.addi %0, %arg1 : i32
    %c0_i32 = arith.constant 0 : i32
    %c0_i32_0 = arith.constant 0 : i32
    return %c0_i32, %1 : i32, i32
  }
  func.func @transform_2(%arg0: i32, %arg1: i32) -> (i32, i32) {
    %c0_i32 = arith.constant 0 : i32
    %c0_i32_0 = arith.constant 0 : i32
    %c0_i32_1 = arith.constant 0 : i32
    return %c0_i32, %c0_i32_0 : i32, i32
  }
  func.func @transform_3(%arg0: i32, %arg1: i32) -> (i32, i32) {
    %c0_i32 = arith.constant 0 : i32
    %c0_i32_0 = arith.constant 0 : i32
    return %arg0, %c0_i32 : i32, i32
  }
}

</mosaic_0001>

<llo_original>
// kernel: tpu_custom_call.1
$region0: #{tpu_custom_call.1}
  #allocation0 [shape = 'u32[]', space=smem, size = 0x4, offset = 0x4, fixed_abs, tag = 'smem constant byte address 0x4 - core index']
  #allocation1 [shape = 'u32[144,128]{1,0:T(1,128)}', space=vmem, size = 0x12000, scoped, tag = 'internal scratch']
  %s0 = inlined_call_operand.hbm [shape: f32[8,256], index: 0, kind: input, shape index: {}]
  %s1 = inlined_call_operand.hbm [shape: f32[8,256], index: 1, kind: input, shape index: {}]
  %s2 = inlined_call_operand.vmem [shape: f32[8,1], index: 2, kind: input, shape index: {}]
  %s3 = inlined_call_operand.hbm [shape: f32[8,128], index: 3, kind: output, shape index: {}]
  %s4 = sld [smem:[#allocation0]]
  $region38: #{tpu_custom_call.1} parent=0
    _
  %s6 = ssub.s32 1, %s4
  %s7 = scalar_select 0, %s6, %s4
  $region1: #{tpu_custom_call.1} parent=0
    #allocation2 [shape = 'u8[8192]{0}', space=vmem, size = 0x2000, scoped, tag = 'input window, operand 0, single buffered']
    #allocation3 [shape = 's32[1]{0}', space=sflag, size = 0x4, scoped, tag = 'scoped memory for tpu_custom_call.1']
    #allocation4 [shape = 's32[1]{0}', space=sflag, size = 0x4, scoped, tag = 'scoped memory for tpu_custom_call.1']
    #allocation5 [shape = 'u8[8192]{0}', space=vmem, size = 0x2000, scoped, tag = 'input window, operand 1, single buffered']
    #allocation6 [shape = 's32[1]{0}', space=sflag, size = 0x4, scoped, tag = 'scoped memory for tpu_custom_call.1']
    #allocation7 [shape = 'u8[4096]{0}', space=vmem, size = 0x1000, scoped, tag = 'output window, operand 0, single buffered']
    %8 = vsyncpa [#allocation3], 0
    %9 = vsyncpa [#allocation6], 0
    %10 = vsyncpa [#allocation4], 0
    // Predicated region
    $region2: #{tpu_custom_call.1} parent=1 // pred_check
      _
    $region3: #{tpu_custom_call.1} parent=1 // pred_check_branch
      %12 = sbr.rel (0) target = $region5
    $region4: #{tpu_custom_call.1} parent=1 // pred_region
      %s13 = sadd.s32 0, 0
      %s14 = smul.u32 2, %s13
      %s16 = ssub.s32 256, 256
      %17 = vsyncadd [#allocation3], %s16
      %s18 = smul.addr %s14, 128
      %s19 = scalar_lea.hbm %s0, %s18
      %s21 = sshll.u32 [#allocation2], 4
      %s22 = int_to_ptr.vmem [resolvable:$true] %s21
      %24 = dma.hbm_to_vmem [thread:$0]  %s19, 256, %s22, [#allocation3]
    $region5: #{tpu_custom_call.1} parent=1 // pred_fallthru
      _
    // Predicated region
    $region6: #{tpu_custom_call.1} parent=1 // pred_check
      _
    $region7: #{tpu_custom_call.1} parent=1 // pred_check_branch
      %26 = sbr.rel (0) target = $region9
    $region8: #{tpu_custom_call.1} parent=1 // pred_region
      %s27 = sadd.s32 0, 0
      %s28 = smul.u32 2, %s27
      %s30 = ssub.s32 256, 256
      %31 = vsyncadd [#allocation6], %s30
      %s32 = smul.addr %s28, 128
      %s33 = scalar_lea.hbm %s1, %s32
      %s35 = sshll.u32 [#allocation5], 4
      %s36 = int_to_ptr.vmem [resolvable:$true] %s35
      %38 = dma.hbm_to_vmem [thread:$0]  %s33, 256, %s36, [#allocation6]
    $region9: #{tpu_custom_call.1} parent=1 // pred_fallthru
      _
    // Predicated region
    $region10: #{tpu_custom_call.1} parent=1 // pred_check
      _
    $region11: #{tpu_custom_call.1} parent=1 // pred_check_branch
      %40 = sbr.rel (0) target = $region13
    $region12: #{tpu_custom_call.1} parent=1 // pred_region
      _
    $region13: #{tpu_custom_call.1} parent=1 // pred_fallthru
      _
    // Predicated region
    $region14: #{tpu_custom_call.1} parent=1 // pred_check
      _
    $region15: #{tpu_custom_call.1} parent=1 // pred_check_branch
      %42 = sbr.rel (0) target = $region17
    $region16: #{tpu_custom_call.1} parent=1 // pred_region
      %43 = dma.done [#allocation3], 256
    $region17: #{tpu_custom_call.1} parent=1 // pred_fallthru
      _
    // Predicated region
    $region18: #{tpu_custom_call.1} parent=1 // pred_check
      _
    $region19: #{tpu_custom_call.1} parent=1 // pred_check_branch
      %45 = sbr.rel (0) target = $region21
    $region20: #{tpu_custom_call.1} parent=1 // pred_region
      %46 = dma.done [#allocation6], 256
    $region21: #{tpu_custom_call.1} parent=1 // pred_fallthru
      _
    %s47 = sadd.s32 0, 0
    %s48 = smul.u32 2, %s47
    %s49 = sadd.s32 0, 0
    %s50 = smul.u32 2, %s49
    %p51 = scmp.eq.s32.totalorder 0, 0
    // Predicated region
    $region22: #{tpu_custom_call.1} parent=1 // pred_check
      %p52 = pneg %p51
    $region23: #{tpu_custom_call.1} parent=1 // pred_check_branch
      %54 = sbr.rel (%p52) target = $region25
    $region24: #{tpu_custom_call.1} parent=1 // pred_region
      %55 = vst [vmem:[#allocation7] sm:$0xff] 0.0
    $region25: #{tpu_custom_call.1} parent=1 // pred_fallthru
      _
    %v56 = vld [vmem:[#allocation2] sm:$0xff]
    %v57 = vld [vmem:[#allocation2 + $0x8] sm:$0xff]
    %v58 = vld [vmem:[#allocation5] sm:$0xff]
    %v59 = vld [vmem:[#allocation5 + $0x8] sm:$0xff]
    %v60 = vld [vmem:[%s2] sm:$0xff]
    %v61 = vsub.f32 %v56, %v58
    %v62 = vsub.f32 %v57, %v59
    %64 = vset.pattern.permute.xlu0 0
    %65 = vperm.xlu0 %64, %v60
    %v66 = vpop.permute.xlu0 %65
    %v68 = vmul.f32 %v61, %v66
    %v69 = vmul.f32 %v62, %v66
    %v70 = vmul.f32 %v68, %v68
    %v71 = vmul.f32 %v69, %v69
    %v72 = vcombine.high %v70, 0.0
    %v74 = vunpack.c.l.s4 1983009808
    %v75 = vunpack.c.0.s8 %v74
    %v76 = vlaneseq
    %v77 = vshrl.u32 %v76, 7
    %v78 = vsub.s32 %v75, %v77
    %v79 = vrot.slane %v70, %v78
    %v81 = vunpack.c.l.s4 1983009808
    %v82 = vunpack.c.0.s8 %v81
    %v83 = vlaneseq
    %v84 = vshrl.u32 %v83, 7
    %v85 = vsub.s32 %v82, %v84
    %v86 = vrot.slane %v72, %v85
    %v87 = vcombine.high %v71, 0.0
    %v89 = vunpack.c.l.s4 1983009808
    %v90 = vunpack.c.0.s8 %v89
    %v91 = vlaneseq
    %v92 = vshrl.u32 %v91, 7
    %v93 = vsub.s32 %v90, %v92
    %v94 = vrot.slane %v71, %v93
    %v96 = vunpack.c.l.s4 1983009808
    %v97 = vunpack.c.0.s8 %v96
    %v98 = vlaneseq
    %v99 = vshrl.u32 %v98, 7
    %v100 = vsub.s32 %v97, %v99
    %v101 = vrot.slane %v87, %v100
    %v102 = vcombine.low %v79, %v94
    %v103 = vcombine.high %v79, %v94
    %v105 = vunpack.c.l.s4 1934713408
    %v106 = vunpack.c.0.s8 %v105
    %v107 = vlaneseq
    %v108 = vshrl.u32 %v107, 7
    %v109 = vsub.s32 %v106, %v108
    %v110 = vrot.slane %v102, %v109
    %v112 = vunpack.c.l.s4 1934713408
    %v113 = vunpack.c.0.s8 %v112
    %v114 = vlaneseq
    %v115 = vshrl.u32 %v114, 7
    %v116 = vsub.s32 %v113, %v115
    %v117 = vrot.slane %v103, %v116
    %v118 = vcombine.low %v86, %v101
    %v119 = vcombine.high %v86, %v101
    %v121 = vunpack.c.l.s4 1934713408
    %v122 = vunpack.c.0.s8 %v121
    %v123 = vlaneseq
    %v124 = vshrl.u32 %v123, 7
    %v125 = vsub.s32 %v122, %v124
    %v126 = vrot.slane %v118, %v125
    %v128 = vunpack.c.l.s4 1934713408
    %v129 = vunpack.c.0.s8 %v128
    %v130 = vlaneseq
    %v131 = vshrl.u32 %v130, 7
    %v132 = vsub.s32 %v129, %v131
    %v133 = vrot.slane %v119, %v132
    %v134 = vcombine.high %v110, 0.0
    %v135 = vcombine.high %v117, 0.0
    %v136 = vcombine.high %v126, 0.0
    %v137 = vcombine.high %v133, 0.0
    %vm138 = vcmask 1041408
    %v139 = vsel %vm138, %v110, 0.0
    %v140 = vrot.slane %v139, 4
    %v141 = vadd.f32 %v139, %v140
    %v142 = vrot.slane %v141, 2
    %v143 = vadd.f32 %v141, %v142
    %v144 = vrot.slane %v143, 1
    %v145 = vadd.f32 %v143, %v144
    %v146 = vsel %vm138, %v134, 0.0
    %v147 = vrot.slane %v146, 4
    %v148 = vadd.f32 %v146, %v147
    %v149 = vrot.slane %v148, 2
    %v150 = vadd.f32 %v148, %v149
    %v151 = vrot.slane %v150, 1
    %v152 = vadd.f32 %v150, %v151
    %v153 = vsel %vm138, %v117, 0.0
    %v154 = vrot.slane %v153, 4
    %v155 = vadd.f32 %v153, %v154
    %v156 = vrot.slane %v155, 2
    %v157 = vadd.f32 %v155, %v156
    %v158 = vrot.slane %v157, 1
    %v159 = vadd.f32 %v157, %v158
    %v160 = vsel %vm138, %v135, 0.0
    %v161 = vrot.slane %v160, 4
    %v162 = vadd.f32 %v160, %v161
    %v163 = vrot.slane %v162, 2
    %v164 = vadd.f32 %v162, %v163
    %v165 = vrot.slane %v164, 1
    %v166 = vadd.f32 %v164, %v165
    %v167 = vsel %vm138, %v126, 0.0
    %v168 = vrot.slane %v167, 4
    %v169 = vadd.f32 %v167, %v168
    %v170 = vrot.slane %v169, 2
    %v171 = vadd.f32 %v169, %v170
    %v172 = vrot.slane %v171, 1
    %v173 = vadd.f32 %v171, %v172
    %v174 = vsel %vm138, %v136, 0.0
    %v175 = vrot.slane %v174, 4
    %v176 = vadd.f32 %v174, %v175
    %v177 = vrot.slane %v176, 2
    %v178 = vadd.f32 %v176, %v177
    %v179 = vrot.slane %v178, 1
    %v180 = vadd.f32 %v178, %v179
    %v181 = vsel %vm138, %v133, 0.0
    %v182 = vrot.slane %v181, 4
    %v183 = vadd.f32 %v181, %v182
    %v184 = vrot.slane %v183, 2
    %v185 = vadd.f32 %v183, %v184
    %v186 = vrot.slane %v185, 1
    %v187 = vadd.f32 %v185, %v186
    %v188 = vsel %vm138, %v137, 0.0
    %v189 = vrot.slane %v188, 4
    %v190 = vadd.f32 %v188, %v189
    %v191 = vrot.slane %v190, 2
    %v192 = vadd.f32 %v190, %v191
    %v193 = vrot.slane %v192, 1
    %v194 = vadd.f32 %v192, %v193
    %v195 = vld [vmem:[#allocation7] sm:$0xff]
    %vm204 = vcmask 1041409
    %v205 = vsel %vm204, %v152, %v145
    %vm206 = vcmask 1042434
    %v207 = vsel %vm206, %v159, %v205
    %vm208 = vcmask 1043459
    %v209 = vsel %vm208, %v166, %v207
    %vm210 = vcmask 1044484
    %v211 = vsel %vm210, %v173, %v209
    %vm212 = vcmask 1045509
    %v213 = vsel %vm212, %v180, %v211
    %vm214 = vcmask 1046534
    %v215 = vsel %vm214, %v187, %v213
    %vm216 = vcmask 1047559
    %v217 = vsel %vm216, %v194, %v215
    %v219 = vadd.f32 %v195, %v217
    %220 = vst [vmem:[#allocation7] sm:$0xff] %v219
    // Predicated region
    $region26: #{tpu_custom_call.1} parent=1 // pred_check
      %p221 = pneg %p51
    $region27: #{tpu_custom_call.1} parent=1 // pred_check_branch
      %223 = sbr.rel (%p221) target = $region29
    $region28: #{tpu_custom_call.1} parent=1 // pred_region
      %v224 = vld [vmem:[#allocation7] sm:$0xff]
      %v225 = vmul.f32 %v224, 0.00034179687
      %226 = vst [vmem:[#allocation7] sm:$0xff] %v225
    $region29: #{tpu_custom_call.1} parent=1 // pred_fallthru
      _
    // Predicated region
    $region30: #{tpu_custom_call.1} parent=1 // pred_check
      _
    $region31: #{tpu_custom_call.1} parent=1 // pred_check_branch
      %228 = sbr.rel (0) target = $region33
    $region32: #{tpu_custom_call.1} parent=1 // pred_region
      %s230 = ssub.s32 128, 128
      %231 = vsyncadd [#allocation4], %s230
      %s233 = sshll.u32 [#allocation7], 4
      %s234 = int_to_ptr.vmem [resolvable:$true] %s233
      %236 = dma.vmem_to_hbm [thread:$0]  %s234, 128, %s3, [#allocation4]
    $region33: #{tpu_custom_call.1} parent=1 // pred_fallthru
      _
    // Predicated region
    $region34: #{tpu_custom_call.1} parent=1 // pred_check
      _
    $region35: #{tpu_custom_call.1} parent=1 // pred_check_branch
      %238 = sbr.rel (0) target = $region37
    $region36: #{tpu_custom_call.1} parent=1 // pred_region
      %239 = dma.done [#allocation4], 128
    $region37: #{tpu_custom_call.1} parent=1 // pred_fallthru
      _
    %240 = vsyncpa [#allocation3], 1
    %241 = vsyncpa [#allocation6], 1
    %242 = vsyncpa [#allocation4], 1

</llo_original>
